<compile_context>
chip_gen: v7x
topology: tpu7x:2x2x1
jax: 0.10.0
libtpu: 0.0.40
codegen_flags: <defaults>
</compile_context>

<pallas_src>
import jax
import jax.numpy as jnp
import numpy as np
from jax.experimental import pallas as pl
from jax.experimental.pallas import tpu as pltpu

LANE = 128  # TPU lane width; hidden(64) / action_dim pad up to this (free on the MXU).


def _round_up(x, m):
    return (x + m - 1) // m * m


def dqn_kernel(x_ref, w1_ref, w2_ref, w3_ref, b_ref, o_ref):
    """Fused 3-layer MLP forward on one (TILE_B, state_dim) batch tile.

    Weights are (in, out) zero-padded to 128 output lanes and stored bf16;
    biases are packed as rows of a (3, 128) f32 array. All intermediates live
    in vregs (no VMEM round-trips between layers).
    """
    x = x_ref[...].astype(jnp.bfloat16)  # bf16 matmul inputs, f32 accumulation
    b = b_ref[...]                       # (3, LANE) f32, loaded once

    # Layer 1: Linear(state_dim -> 64, padded to 128) + ReLU
    h1 = jnp.dot(x, w1_ref[...], preferred_element_type=jnp.float32) + b[0:1, :]
    h1 = jnp.maximum(h1, 0.0)

    # Layer 2: Linear(64 -> 64, padded) + ReLU
    h2 = jnp.dot(h1.astype(jnp.bfloat16), w2_ref[...],
                 preferred_element_type=jnp.float32) + b[1:2, :]
    h2 = jnp.maximum(h2, 0.0)

    # Layer 3: Linear(64 -> action_dim, padded), no activation
    out = jnp.dot(h2.astype(jnp.bfloat16), w3_ref[...],
                  preferred_element_type=jnp.float32) + b[2:3, :]
    o_ref[...] = out.astype(o_ref.dtype)  # lane-dense (TILE_B, 128) unmasked store


def dqn_forward(x, packed, *, tile_b=None):
    """Run the fused DQN forward. Returns (batch, action_dim) f32 Q-values."""
    w1, w2, w3, b, action_dim = packed
    batch, state_dim = x.shape

    # Pick the largest practical batch tile (multiple of 8, capped at 256).
    if tile_b is None:
        tile_b = min(256, _round_up(batch, 8))
    tile_b = max(8, _round_up(tile_b, 8))

    padded_batch = _round_up(batch, tile_b)
    if padded_batch != batch:
        x = jnp.pad(x, ((0, padded_batch - batch), (0, 0)))

    grid = (padded_batch // tile_b,)

    out_padded = pl.pallas_call(
        dqn_kernel,
        out_shape=jax.ShapeDtypeStruct((padded_batch, LANE), jnp.float32),
        grid_spec=pltpu.PrefetchScalarGridSpec(
            num_scalar_prefetch=0,
            grid=grid,
            in_specs=[
                pl.BlockSpec((tile_b, state_dim), lambda i: (i, 0)),  # x tile, pipelined
                pl.BlockSpec(w1.shape, lambda i: (0, 0)),             # weights: DMA'd once,
                pl.BlockSpec(w2.shape, lambda i: (0, 0)),             # resident across steps
                pl.BlockSpec(w3.shape, lambda i: (0, 0)),
                pl.BlockSpec(b.shape, lambda i: (0, 0)),              # packed biases
            ],
            out_specs=pl.BlockSpec((tile_b, LANE), lambda i: (i, 0)),
        ),
        compiler_params=pltpu.CompilerParams(
            dimension_semantics=("parallel",),  # megacore split on v7x
        ),
    )(x, w1, w2, w3, b)

    return out_padded[:batch, :action_dim]


def init_dqn_params(key, state_dim, action_dim, hidden=64):
    """PyTorch-default Linear init: U(-1/sqrt(fan_in), 1/sqrt(fan_in)).
    Weights stored as (in, out) so y = x @ W + b == nn.Linear(x)."""
    keys = jax.random.split(key, 6)

    def linear(kw, kb, fan_in, fan_out):
        bound = 1.0 / np.sqrt(fan_in)
        w = jax.random.uniform(kw, (fan_in, fan_out), jnp.float32, -bound, bound)
        b = jax.random.uniform(kb, (fan_out,), jnp.float32, -bound, bound)
        return w, b

    w1, b1 = linear(keys[0], keys[1], state_dim, hidden)
    w2, b2 = linear(keys[2], keys[3], hidden, hidden)
    w3, b3 = linear(keys[4], keys[5], hidden, action_dim)
    return (w1, b1, w2, b2, w3, b3)


def pack_dqn_params(params):
    """One-time prep: zero-pad hidden/output dims to 128 lanes, cast weights to
    bf16, and pack the three biases into a single (3, 128) f32 array."""
    w1, b1, w2, b2, w3, b3 = params
    state_dim = w1.shape[0]
    action_dim = w3.shape[1]

    def pad_to(a, shape):
        return jnp.pad(a, [(0, s - d) for d, s in zip(a.shape, shape)])

    w1p = pad_to(w1, (state_dim, LANE)).astype(jnp.bfloat16)
    w2p = pad_to(w2, (LANE, LANE)).astype(jnp.bfloat16)
    w3p = pad_to(w3, (LANE, LANE)).astype(jnp.bfloat16)
    bpk = jnp.stack([pad_to(b1, (LANE,)),
                     pad_to(b2, (LANE,)),
                     pad_to(b3, (LANE,))]).astype(jnp.float32)
    return (w1p, w2p, w3p, bpk, action_dim)


def dqn_reference_f32(x, params):
    """Pure f32 JAX reference matching the PyTorch module semantics."""
    w1, b1, w2, b2, w3, b3 = params
    h1 = jnp.maximum(x @ w1 + b1, 0.0)
    h2 = jnp.maximum(h1 @ w2 + b2, 0.0)
    return h2 @ w3 + b3


def dqn_reference_bf16(x, packed):
    """Reference with the same bf16 casts as the kernel (tight tolerance check)."""
    w1, w2, w3, b, action_dim = packed
    xb = x.astype(jnp.bfloat16)
    h1 = jnp.maximum(jnp.dot(xb, w1, preferred_element_type=jnp.float32) + b[0:1], 0.0)
    h2 = jnp.maximum(jnp.dot(h1.astype(jnp.bfloat16), w2,
                             preferred_element_type=jnp.float32) + b[1:2], 0.0)
    out = jnp.dot(h2.astype(jnp.bfloat16), w3,
                  preferred_element_type=jnp.float32) + b[2:3]
    return out[:, :action_dim]


if __name__ == "__main__":
    key = jax.random.PRNGKey(0)
    k_params, k_x1, k_x2 = jax.random.split(key, 3)

    state_dim, action_dim = 16, 8
    raw_params = init_dqn_params(k_params, state_dim, action_dim)
    packed = pack_dqn_params(raw_params)

    # Case 1: small batch, single grid step.
    x1 = jax.random.normal(k_x1, (8, state_dim), jnp.float32)
    out1 = jax.block_until_ready(dqn_forward(x1, packed))
    np.testing.assert_allclose(np.asarray(out1),
                               np.asarray(dqn_reference_bf16(x1, packed)),
                               rtol=1e-3, atol=1e-3)
    np.testing.assert_allclose(np.asarray(out1),
                               np.asarray(dqn_reference_f32(x1, raw_params)),
                               rtol=5e-2, atol=3e-2)

    # Case 2: batch not a multiple of the tile -> padded batch, multi-step grid
    # with weights resident across steps.
    x2 = jax.random.normal(k_x2, (20, state_dim), jnp.float32)
    out2 = jax.block_until_ready(dqn_forward(x2, packed, tile_b=8))
    np.testing.assert_allclose(np.asarray(out2),
                               np.asarray(dqn_reference_bf16(x2, packed)),
                               rtol=1e-3, atol=1e-3)
    np.testing.assert_allclose(np.asarray(out2),
                               np.asarray(dqn_reference_f32(x2, raw_params)),
                               rtol=5e-2, atol=3e-2)

    print("KERNEL_OK")
</pallas_src>

<mosaic_0001>
module attributes {stable_mosaic.version = 11 : i64} {
  func.func @dqn_kernel(%arg0: i32, %arg1: memref<8x16xf32, #tpu.memory_space<vmem>>, %arg2: memref<16x128xbf16, #tpu.memory_space<vmem>>, %arg3: memref<128x128xbf16, #tpu.memory_space<vmem>>, %arg4: memref<128x128xbf16, #tpu.memory_space<vmem>>, %arg5: memref<3x128xf32, #tpu.memory_space<vmem>>, %arg6: memref<8x128xf32, #tpu.memory_space<vmem>>) attributes {dimension_semantics = [#tpu.dimension_semantics<parallel>], iteration_bounds = array<i64: 1>, scalar_prefetch = 0 : i64, scratch_operands = 0 : i64, tpu.core_type = #tpu.core_type<tc>, window_params = [{transform_indices = @transform_0, window_bounds = array<i64: 8, 16>}, {pipeline_mode = #tpu.pipeline_mode<synchronous>, transform_indices = @transform_1, window_bounds = array<i64: 16, 128>}, {pipeline_mode = #tpu.pipeline_mode<synchronous>, transform_indices = @transform_2, window_bounds = array<i64: 128, 128>}, {pipeline_mode = #tpu.pipeline_mode<synchronous>, transform_indices = @transform_3, window_bounds = array<i64: 128, 128>}, {pipeline_mode = #tpu.pipeline_mode<synchronous>, transform_indices = @transform_4, window_bounds = array<i64: 3, 128>}, {transform_indices = @transform_5, window_bounds = array<i64: 8, 128>}]} {
    %c0 = arith.constant 0 : index
    %c0_0 = arith.constant 0 : index
    %0 = vector.load %arg1[%c0, %c0_0] : memref<8x16xf32, #tpu.memory_space<vmem>>, vector<8x16xf32>
    %1 = arith.truncf %0 : vector<8x16xf32> to vector<8x16xbf16>
    %c0_1 = arith.constant 0 : index
    %c0_2 = arith.constant 0 : index
    %2 = vector.load %arg5[%c0_1, %c0_2] : memref<3x128xf32, #tpu.memory_space<vmem>>, vector<3x128xf32>
    %c0_3 = arith.constant 0 : index
    %c0_4 = arith.constant 0 : index
    %3 = vector.load %arg2[%c0_3, %c0_4] : memref<16x128xbf16, #tpu.memory_space<vmem>>, vector<16x128xbf16>
    %cst = arith.constant dense<0.000000e+00> : vector<8x128xf32>
    %4 = tpu.matmul %1, %3, %cst {dimension_numbers = #tpu.dot_dimension_numbers<[1], [0], [0], [1], [0, 0, 1, 1], [], []>} : vector<8x16xbf16>, vector<16x128xbf16>, vector<8x128xf32> -> vector<8x128xf32>
    %5 = vector.extract_strided_slice %2 {offsets = [0, 0], sizes = [1, 128], strides = [1, 1]} : vector<3x128xf32> to vector<1x128xf32>
    %6 = vector.broadcast %5 : vector<1x128xf32> to vector<8x128xf32>
    %7 = arith.addf %4, %6 : vector<8x128xf32>
    %cst_5 = arith.constant 0.000000e+00 : f32
    %8 = vector.broadcast %cst_5 : f32 to vector<8x128xf32>
    %9 = arith.maximumf %7, %8 : vector<8x128xf32>
    %10 = arith.truncf %9 : vector<8x128xf32> to vector<8x128xbf16>
    %c0_6 = arith.constant 0 : index
    %c0_7 = arith.constant 0 : index
    %11 = vector.load %arg3[%c0_6, %c0_7] : memref<128x128xbf16, #tpu.memory_space<vmem>>, vector<128x128xbf16>
    %cst_8 = arith.constant dense<0.000000e+00> : vector<8x128xf32>
    %12 = tpu.matmul %10, %11, %cst_8 {dimension_numbers = #tpu.dot_dimension_numbers<[1], [0], [0], [1], [0, 0, 1, 1], [], []>} : vector<8x128xbf16>, vector<128x128xbf16>, vector<8x128xf32> -> vector<8x128xf32>
    %13 = vector.extract_strided_slice %2 {offsets = [1, 0], sizes = [1, 128], strides = [1, 1]} : vector<3x128xf32> to vector<1x128xf32>
    %14 = vector.broadcast %13 : vector<1x128xf32> to vector<8x128xf32>
    %15 = arith.addf %12, %14 : vector<8x128xf32>
    %cst_9 = arith.constant 0.000000e+00 : f32
    %16 = vector.broadcast %cst_9 : f32 to vector<8x128xf32>
    %17 = arith.maximumf %15, %16 : vector<8x128xf32>
    %18 = arith.truncf %17 : vector<8x128xf32> to vector<8x128xbf16>
    %c0_10 = arith.constant 0 : index
    %c0_11 = arith.constant 0 : index
    %19 = vector.load %arg4[%c0_10, %c0_11] : memref<128x128xbf16, #tpu.memory_space<vmem>>, vector<128x128xbf16>
    %cst_12 = arith.constant dense<0.000000e+00> : vector<8x128xf32>
    %20 = tpu.matmul %18, %19, %cst_12 {dimension_numbers = #tpu.dot_dimension_numbers<[1], [0], [0], [1], [0, 0, 1, 1], [], []>} : vector<8x128xbf16>, vector<128x128xbf16>, vector<8x128xf32> -> vector<8x128xf32>
    %21 = vector.extract_strided_slice %2 {offsets = [2, 0], sizes = [1, 128], strides = [1, 1]} : vector<3x128xf32> to vector<1x128xf32>
    %22 = vector.broadcast %21 : vector<1x128xf32> to vector<8x128xf32>
    %23 = arith.addf %20, %22 : vector<8x128xf32>
    %c0_13 = arith.constant 0 : index
    %c0_14 = arith.constant 0 : index
    %24 = vector.load %arg6[%c0_13, %c0_14] : memref<8x128xf32, #tpu.memory_space<vmem>>, vector<8x128xf32>
    tpu.vector_store %arg6[%c0_13, %c0_14], %23 {strides = array<i32>} : memref<8x128xf32, #tpu.memory_space<vmem>>, vector<8x128xf32>,
    return
  }
  func.func @transform_0(%arg0: i32) -> (i32, i32) {
    %c0_i32 = arith.constant 0 : i32
    %c0_i32_0 = arith.constant 0 : i32
    return %arg0, %c0_i32 : i32, i32
  }
  func.func @transform_1(%arg0: i32) -> (i32, i32) {
    %c0_i32 = arith.constant 0 : i32
    %c0_i32_0 = arith.constant 0 : i32
    %c0_i32_1 = arith.constant 0 : i32
    return %c0_i32, %c0_i32_0 : i32, i32
  }
  func.func @transform_2(%arg0: i32) -> (i32, i32) {
    %c0_i32 = arith.constant 0 : i32
    %c0_i32_0 = arith.constant 0 : i32
    %c0_i32_1 = arith.constant 0 : i32
    return %c0_i32, %c0_i32_0 : i32, i32
  }
  func.func @transform_3(%arg0: i32) -> (i32, i32) {
    %c0_i32 = arith.constant 0 : i32
    %c0_i32_0 = arith.constant 0 : i32
    %c0_i32_1 = arith.constant 0 : i32
    return %c0_i32, %c0_i32_0 : i32, i32
  }
  func.func @transform_4(%arg0: i32) -> (i32, i32) {
    %c0_i32 = arith.constant 0 : i32
    %c0_i32_0 = arith.constant 0 : i32
    %c0_i32_1 = arith.constant 0 : i32
    return %c0_i32, %c0_i32_0 : i32, i32
  }
  func.func @transform_5(%arg0: i32) -> (i32, i32) {
    %c0_i32 = arith.constant 0 : i32
    %c0_i32_0 = arith.constant 0 : i32
    return %arg0, %c0_i32 : i32, i32
  }
}

</mosaic_0001>

<llo_original>
// kernel: tpu_custom_call.1
$region0: #{tpu_custom_call.1}
  #allocation0 [shape = 'u32[]', space=smem, size = 0x4, offset = 0x4, fixed_abs, tag = 'smem constant byte address 0x4 - core index']
  #allocation1 [shape = 'u32[144,128]{1,0:T(1,128)}', space=vmem, size = 0x12000, scoped, tag = 'internal scratch']
  %s0 = inlined_call_operand.hbm [shape: f32[8,16], index: 0, kind: input, shape index: {}]
  %s1 = inlined_call_operand.hbm [shape: bf16[16,128], index: 1, kind: input, shape index: {}]
  %s2 = inlined_call_operand.hbm [shape: bf16[128,128], index: 2, kind: input, shape index: {}]
  %s3 = inlined_call_operand.hbm [shape: bf16[128,128], index: 3, kind: input, shape index: {}]
  %s4 = inlined_call_operand.vmem [shape: f32[3,128], index: 4, kind: input, shape index: {}]
  %s5 = inlined_call_operand.hbm [shape: f32[8,128], index: 5, kind: output, shape index: {}]
  %s6 = sld [smem:[#allocation0]]
  $region46: #{tpu_custom_call.1} parent=0
    _
  %s8 = ssub.s32 1, %s6
  %s9 = scalar_select 0, %s8, %s6
  $region1: #{tpu_custom_call.1} parent=0
    #allocation2 [shape = 'u8[4096]{0}', space=vmem, size = 0x1000, scoped, tag = 'input window, operand 0, single buffered']
    #allocation3 [shape = 's32[1]{0}', space=sflag, size = 0x4, scoped, tag = 'scoped memory for tpu_custom_call.1']
    #allocation4 [shape = 's32[1]{0}', space=sflag, size = 0x4, scoped, tag = 'scoped memory for tpu_custom_call.1']
    #allocation5 [shape = 'u8[4096]{0}', space=vmem, size = 0x1000, scoped, tag = 'input window, operand 1, single buffered']
    #allocation6 [shape = 's32[1]{0}', space=sflag, size = 0x4, scoped, tag = 'scoped memory for tpu_custom_call.1']
    #allocation7 [shape = 'u8[32768]{0}', space=vmem, size = 0x8000, scoped, tag = 'input window, operand 2, single buffered']
    #allocation8 [shape = 'u8[32768]{0}', space=vmem, size = 0x8000, scoped, tag = 'input window, operand 3, single buffered']
    #allocation9 [shape = 's32[1]{0}', space=sflag, size = 0x4, scoped, tag = 'scoped memory for tpu_custom_call.1']
    #allocation10 [shape = 'u8[4096]{0}', space=vmem, size = 0x1000, scoped, tag = 'output window, operand 0, single buffered']
    %10 = vsyncpa [#allocation3], 0
    %11 = vsyncpa [#allocation6], 0
    %12 = vsyncpa [#allocation9], 0
    %13 = vsyncpa [#allocation4], 0
    // Predicated region
    $region2: #{tpu_custom_call.1} parent=1 // pred_check
      _
    $region3: #{tpu_custom_call.1} parent=1 // pred_check_branch
      %15 = sbr.rel (0) target = $region5
    $region4: #{tpu_custom_call.1} parent=1 // pred_region
      %s17 = ssub.s32 128, 128
      %18 = vsyncadd [#allocation3], %s17
      %s20 = sshll.u32 [#allocation2], 4
      %s21 = int_to_ptr.vmem [resolvable:$true] %s20
      %23 = dma.hbm_to_vmem [thread:$0]  %s0, 128, %s21, [#allocation3]
    $region5: #{tpu_custom_call.1} parent=1 // pred_fallthru
      _
    // Predicated region
    $region6: #{tpu_custom_call.1} parent=1 // pred_check
      _
    $region7: #{tpu_custom_call.1} parent=1 // pred_check_branch
      %25 = sbr.rel (0) target = $region9
    $region8: #{tpu_custom_call.1} parent=1 // pred_region
      %s27 = ssub.s32 128, 128
      %28 = vsyncadd [#allocation6], %s27
      %s29 = sshll.u32 [#allocation5], 4
      %s30 = int_to_ptr.vmem [resolvable:$true] %s29
      %35 = dma.hbm_to_vmem [thread:$0]  %s1, 128, %s30, [#allocation6], 64, 64, 4
    $region9: #{tpu_custom_call.1} parent=1 // pred_fallthru
      _
    // Predicated region
    $region10: #{tpu_custom_call.1} parent=1 // pred_check
      _
    $region11: #{tpu_custom_call.1} parent=1 // pred_check_branch
      %37 = sbr.rel (0) target = $region13
    $region12: #{tpu_custom_call.1} parent=1 // pred_region
      %s39 = ssub.s32 1024, 1024
      %40 = vsyncadd [#allocation6], %s39
      %s41 = sshll.u32 [#allocation7], 4
      %s42 = int_to_ptr.vmem [resolvable:$true] %s41
      %47 = dma.hbm_to_vmem [thread:$0]  %s2, 1024, %s42, [#allocation6], 64, 64, 4
    $region13: #{tpu_custom_call.1} parent=1 // pred_fallthru
      _
    // Predicated region
    $region14: #{tpu_custom_call.1} parent=1 // pred_check
      _
    $region15: #{tpu_custom_call.1} parent=1 // pred_check_branch
      %49 = sbr.rel (0) target = $region17
    $region16: #{tpu_custom_call.1} parent=1 // pred_region
      %s51 = ssub.s32 1024, 1024
      %52 = vsyncadd [#allocation9], %s51
      %s53 = sshll.u32 [#allocation8], 4
      %s54 = int_to_ptr.vmem [resolvable:$true] %s53
      %59 = dma.hbm_to_vmem [thread:$0]  %s3, 1024, %s54, [#allocation9], 64, 64, 4
    $region17: #{tpu_custom_call.1} parent=1 // pred_fallthru
      _
    // Predicated region
    $region18: #{tpu_custom_call.1} parent=1 // pred_check
      _
    $region19: #{tpu_custom_call.1} parent=1 // pred_check_branch
      %61 = sbr.rel (0) target = $region21
    $region20: #{tpu_custom_call.1} parent=1 // pred_region
      _
    $region21: #{tpu_custom_call.1} parent=1 // pred_fallthru
      _
    // Predicated region
    $region22: #{tpu_custom_call.1} parent=1 // pred_check
      _
    $region23: #{tpu_custom_call.1} parent=1 // pred_check_branch
      %63 = sbr.rel (0) target = $region25
    $region24: #{tpu_custom_call.1} parent=1 // pred_region
      %64 = dma.done [#allocation3], 128
    $region25: #{tpu_custom_call.1} parent=1 // pred_fallthru
      _
    // Predicated region
    $region26: #{tpu_custom_call.1} parent=1 // pred_check
      _
    $region27: #{tpu_custom_call.1} parent=1 // pred_check_branch
      %66 = sbr.rel (0) target = $region29
    $region28: #{tpu_custom_call.1} parent=1 // pred_region
      %67 = dma.done [#allocation6], 128
    $region29: #{tpu_custom_call.1} parent=1 // pred_fallthru
      _
    // Predicated region
    $region30: #{tpu_custom_call.1} parent=1 // pred_check
      _
    $region31: #{tpu_custom_call.1} parent=1 // pred_check_branch
      %69 = sbr.rel (0) target = $region33
    $region32: #{tpu_custom_call.1} parent=1 // pred_region
      %70 = dma.done [#allocation6], 1024
    $region33: #{tpu_custom_call.1} parent=1 // pred_fallthru
      _
    // Predicated region
    $region34: #{tpu_custom_call.1} parent=1 // pred_check
      _
    $region35: #{tpu_custom_call.1} parent=1 // pred_check_branch
      %72 = sbr.rel (0) target = $region37
    $region36: #{tpu_custom_call.1} parent=1 // pred_region
      %73 = dma.done [#allocation9], 1024
    $region37: #{tpu_custom_call.1} parent=1 // pred_fallthru
      _
    %v75 = vld [vmem:[#allocation2] sm:$0xff]
    %v76 = vpack.c.bf16 %v75, %v75
    %v77 = vld [vmem:[%s4] sm:$0x7]
    %v78 = vld [vmem:[#allocation5] sm:$0xf]
    %v79 = vld [vmem:[#allocation5 + $0x4] sm:$0xf]
    %v80 = vlaneseq
    %v81 = vshrl.u32 %v80, 7
    %v82 = vsub.s32 0, %v81
    %v83 = vrot.slane %v77, %v82
    %v86 = vunpack.c.l.b16 %v78
    %v87 = vunpack.c.l.b16 %v79
    %v88 = vpack.c.b16 %v87, %v86
    %vm90 = vcmask 130048
    %v92 = vsel %vm90, %v76, 0
    %94 = vmatprep.subr.bf16.mxu0 0
    %95 = vmatpush1.bf16.msra.mxu0 %v88
    %96 = vmatprep.subr.bf16.mxu0 0
    %97 = vmatpush1.bf16.msra.mxu0 0
    %98 = vmatprep.subr.bf16.mxu0 0
    %99 = vmatpush1.bf16.msra.mxu0 0
    %100 = vmatprep.subr.bf16.mxu0 0
    %101 = vmatpush1.bf16.msra.mxu0 0
    %102 = vmatprep.subr.bf16.mxu0 0
    %103 = vmatpush1.bf16.msra.mxu0 0
    %104 = vmatprep.subr.bf16.mxu0 0
    %105 = vmatpush1.bf16.msra.mxu0 0
    %106 = vmatprep.subr.bf16.mxu0 0
    %107 = vmatpush1.bf16.msra.mxu0 0
    %108 = vmatprep.subr.bf16.mxu0 0
    %109 = vmatpush1.bf16.msra.mxu0 0
    %110 = vmatprep.subr.bf16.mxu0 0
    %111 = vmatpush1.bf16.msra.mxu0 0
    %112 = vmatprep.subr.bf16.mxu0 0
    %113 = vmatpush1.bf16.msra.mxu0 0
    %114 = vmatprep.subr.bf16.mxu0 0
    %115 = vmatpush1.bf16.msra.mxu0 0
    %116 = vmatprep.subr.bf16.mxu0 0
    %117 = vmatpush1.bf16.msra.mxu0 0
    %118 = vmatprep.subr.bf16.mxu0 0
    %119 = vmatpush1.bf16.msra.mxu0 0
    %120 = vmatprep.subr.bf16.mxu0 0
    %121 = vmatpush1.bf16.msra.mxu0 0
    %122 = vmatprep.subr.bf16.mxu0 0
    %123 = vmatpush1.bf16.msra.mxu0 0
    %124 = vmatprep.subr.bf16.mxu0 0
    %125 = vmatpush1.bf16.msra.mxu0 0
    %126 = vmatprep.mubr.bf16.mxu0 0
    %127 = vmatmul.mubr.bf16.gmra.mrb[0].mxu0 %v92
    %v128 = vpop.f32.mrb[0].mxu0
    %v129 = vadd.f32 %v83, %v128
    %v130 = vpop.f32.mrb[0].mxu0
    %v131 = vpop.f32.mrb[0].mxu0
    %v132 = vpop.f32.mrb[0].mxu0
    %133 = vdwg.mxu0
    %v134 = vmax.f32 %v129, 0.0
    %v135 = vpack.c.bf16 %v134, %v134
    %v136 = vld [vmem:[#allocation7] sm:$0xf]
    %v137 = vld [vmem:[#allocation7 + $0x4] sm:$0xf]
    %v138 = vld [vmem:[#allocation7 + $0x8] sm:$0xf]
    %v139 = vld [vmem:[#allocation7 + $0xc] sm:$0xf]
    %v140 = vld [vmem:[#allocation7 + $0x10] sm:$0xf]
    %v141 = vld [vmem:[#allocation7 + $0x14] sm:$0xf]
    %v142 = vld [vmem:[#allocation7 + $0x18] sm:$0xf]
    %v143 = vld [vmem:[#allocation7 + $0x1c] sm:$0xf]
    %v144 = vld [vmem:[#allocation7 + $0x20] sm:$0xf]
    %v145 = vld [vmem:[#allocation7 + $0x24] sm:$0xf]
    %v146 = vld [vmem:[#allocation7 + $0x28] sm:$0xf]
    %v147 = vld [vmem:[#allocation7 + $0x2c] sm:$0xf]
    %v148 = vld [vmem:[#allocation7 + $0x30] sm:$0xf]
    %v149 = vld [vmem:[#allocation7 + $0x34] sm:$0xf]
    %v150 = vld [vmem:[#allocation7 + $0x38] sm:$0xf]
    %v151 = vld [vmem:[#allocation7 + $0x3c] sm:$0xf]
    %v152 = vlaneseq
    %v153 = vshrl.u32 %v152, 7
    %v154 = vsub.s32 1, %v153
    %v155 = vrot.slane %v77, %v154
    %v172 = vunpack.c.l.b16 %v136
    %v173 = vunpack.c.l.b16 %v137
    %v174 = vunpack.c.l.b16 %v138
    %v175 = vunpack.c.l.b16 %v139
    %v176 = vunpack.c.l.b16 %v140
    %v177 = vunpack.c.l.b16 %v141
    %v178 = vunpack.c.l.b16 %v142
    %v179 = vunpack.c.l.b16 %v143
    %v180 = vunpack.c.l.b16 %v144
    %v181 = vunpack.c.l.b16 %v145
    %v182 = vunpack.c.l.b16 %v146
    %v183 = vunpack.c.l.b16 %v147
    %v184 = vunpack.c.l.b16 %v148
    %v185 = vunpack.c.l.b16 %v149
    %v186 = vunpack.c.l.b16 %v150
    %v187 = vunpack.c.l.b16 %v151
    %v188 = vpack.c.b16 %v173, %v172
    %v189 = vpack.c.b16 %v175, %v174
    %v190 = vpack.c.b16 %v177, %v176
    %v191 = vpack.c.b16 %v179, %v178
    %v192 = vpack.c.b16 %v181, %v180
    %v193 = vpack.c.b16 %v183, %v182
    %v194 = vpack.c.b16 %v185, %v184
    %v195 = vpack.c.b16 %v187, %v186
    %204 = vmatprep.subr.bf16.mxu0 0
    %205 = vmatpush1.bf16.msra.mxu0 %v188
    %206 = vmatprep.subr.bf16.mxu0 0
    %207 = vmatpush1.bf16.msra.mxu0 %v189
    %208 = vmatprep.subr.bf16.mxu0 0
    %209 = vmatpush1.bf16.msra.mxu0 %v190
    %210 = vmatprep.subr.bf16.mxu0 0
    %211 = vmatpush1.bf16.msra.mxu0 %v191
    %212 = vmatprep.subr.bf16.mxu0 0
    %213 = vmatpush1.bf16.msra.mxu0 %v192
    %214 = vmatprep.subr.bf16.mxu0 0
    %215 = vmatpush1.bf16.msra.mxu0 %v193
    %216 = vmatprep.subr.bf16.mxu0 0
    %217 = vmatpush1.bf16.msra.mxu0 %v194
    %218 = vmatprep.subr.bf16.mxu0 0
    %219 = vmatpush1.bf16.msra.mxu0 %v195
    %220 = vmatprep.subr.bf16.mxu0 0
    %221 = vmatpush1.bf16.msra.mxu0 0
    %222 = vmatprep.subr.bf16.mxu0 0
    %223 = vmatpush1.bf16.msra.mxu0 0
    %224 = vmatprep.subr.bf16.mxu0 0
    %225 = vmatpush1.bf16.msra.mxu0 0
    %226 = vmatprep.subr.bf16.mxu0 0
    %227 = vmatpush1.bf16.msra.mxu0 0
    %228 = vmatprep.subr.bf16.mxu0 0
    %229 = vmatpush1.bf16.msra.mxu0 0
    %230 = vmatprep.subr.bf16.mxu0 0
    %231 = vmatpush1.bf16.msra.mxu0 0
    %232 = vmatprep.subr.bf16.mxu0 0
    %233 = vmatpush1.bf16.msra.mxu0 0
    %234 = vmatprep.subr.bf16.mxu0 0
    %235 = vmatpush1.bf16.msra.mxu0 0
    %236 = vmatprep.mubr.bf16.mxu0 0
    %237 = vmatmul.mubr.bf16.gmra.mrb[0].mxu0 %v135
    %v238 = vpop.f32.mrb[0].mxu0
    %v239 = vadd.f32 %v155, %v238
    %v240 = vpop.f32.mrb[0].mxu0
    %v241 = vpop.f32.mrb[0].mxu0
    %v242 = vpop.f32.mrb[0].mxu0
    %243 = vdwg.mxu0
    %v244 = vmax.f32 %v239, 0.0
    %v245 = vpack.c.bf16 %v244, %v244
    %v246 = vld [vmem:[#allocation8] sm:$0xf]
    %v247 = vld [vmem:[#allocation8 + $0x4] sm:$0xf]
    %v248 = vld [vmem:[#allocation8 + $0x8] sm:$0xf]
    %v249 = vld [vmem:[#allocation8 + $0xc] sm:$0xf]
    %v250 = vld [vmem:[#allocation8 + $0x10] sm:$0xf]
    %v251 = vld [vmem:[#allocation8 + $0x14] sm:$0xf]
    %v252 = vld [vmem:[#allocation8 + $0x18] sm:$0xf]
    %v253 = vld [vmem:[#allocation8 + $0x1c] sm:$0xf]
    %v254 = vld [vmem:[#allocation8 + $0x20] sm:$0xf]
    %v255 = vld [vmem:[#allocation8 + $0x24] sm:$0xf]
    %v256 = vld [vmem:[#allocation8 + $0x28] sm:$0xf]
    %v257 = vld [vmem:[#allocation8 + $0x2c] sm:$0xf]
    %v258 = vld [vmem:[#allocation8 + $0x30] sm:$0xf]
    %v259 = vld [vmem:[#allocation8 + $0x34] sm:$0xf]
    %v260 = vld [vmem:[#allocation8 + $0x38] sm:$0xf]
    %v261 = vld [vmem:[#allocation8 + $0x3c] sm:$0xf]
    %v262 = vlaneseq
    %v263 = vshrl.u32 %v262, 7
    %v264 = vsub.s32 2, %v263
    %v265 = vrot.slane %v77, %v264
    %v282 = vunpack.c.l.b16 %v246
    %v283 = vunpack.c.l.b16 %v247
    %v284 = vunpack.c.l.b16 %v248
    %v285 = vunpack.c.l.b16 %v249
    %v286 = vunpack.c.l.b16 %v250
    %v287 = vunpack.c.l.b16 %v251
    %v288 = vunpack.c.l.b16 %v252
    %v289 = vunpack.c.l.b16 %v253
    %v290 = vunpack.c.l.b16 %v254
    %v291 = vunpack.c.l.b16 %v255
    %v292 = vunpack.c.l.b16 %v256
    %v293 = vunpack.c.l.b16 %v257
    %v294 = vunpack.c.l.b16 %v258
    %v295 = vunpack.c.l.b16 %v259
    %v296 = vunpack.c.l.b16 %v260
    %v297 = vunpack.c.l.b16 %v261
    %v298 = vpack.c.b16 %v283, %v282
    %v299 = vpack.c.b16 %v285, %v284
    %v300 = vpack.c.b16 %v287, %v286
    %v301 = vpack.c.b16 %v289, %v288
    %v302 = vpack.c.b16 %v291, %v290
    %v303 = vpack.c.b16 %v293, %v292
    %v304 = vpack.c.b16 %v295, %v294
    %v305 = vpack.c.b16 %v297, %v296
    %314 = vmatprep.subr.bf16.mxu0 0
    %315 = vmatpush1.bf16.msra.mxu0 %v298
    %316 = vmatprep.subr.bf16.mxu0 0
    %317 = vmatpush1.bf16.msra.mxu0 %v299
    %318 = vmatprep.subr.bf16.mxu0 0
    %319 = vmatpush1.bf16.msra.mxu0 %v300
    %320 = vmatprep.subr.bf16.mxu0 0
    %321 = vmatpush1.bf16.msra.mxu0 %v301
    %322 = vmatprep.subr.bf16.mxu0 0
    %323 = vmatpush1.bf16.msra.mxu0 %v302
    %324 = vmatprep.subr.bf16.mxu0 0
    %325 = vmatpush1.bf16.msra.mxu0 %v303
    %326 = vmatprep.subr.bf16.mxu0 0
    %327 = vmatpush1.bf16.msra.mxu0 %v304
    %328 = vmatprep.subr.bf16.mxu0 0
    %329 = vmatpush1.bf16.msra.mxu0 %v305
    %330 = vmatprep.subr.bf16.mxu0 0
    %331 = vmatpush1.bf16.msra.mxu0 0
    %332 = vmatprep.subr.bf16.mxu0 0
    %333 = vmatpush1.bf16.msra.mxu0 0
    %334 = vmatprep.subr.bf16.mxu0 0
    %335 = vmatpush1.bf16.msra.mxu0 0
    %336 = vmatprep.subr.bf16.mxu0 0
    %337 = vmatpush1.bf16.msra.mxu0 0
    %338 = vmatprep.subr.bf16.mxu0 0
    %339 = vmatpush1.bf16.msra.mxu0 0
    %340 = vmatprep.subr.bf16.mxu0 0
    %341 = vmatpush1.bf16.msra.mxu0 0
    %342 = vmatprep.subr.bf16.mxu0 0
    %343 = vmatpush1.bf16.msra.mxu0 0
    %344 = vmatprep.subr.bf16.mxu0 0
    %345 = vmatpush1.bf16.msra.mxu0 0
    %346 = vmatprep.mubr.bf16.mxu0 0
    %347 = vmatmul.mubr.bf16.gmra.mrb[0].mxu0 %v245
    %v348 = vpop.f32.mrb[0].mxu0
    %v349 = vadd.f32 %v265, %v348
    %v350 = vpop.f32.mrb[0].mxu0
    %v351 = vpop.f32.mrb[0].mxu0
    %v352 = vpop.f32.mrb[0].mxu0
    %353 = vdwg.mxu0
    %354 = vst [vmem:[#allocation10] sm:$0xff] %v349
    // Predicated region
    $region38: #{tpu_custom_call.1} parent=1 // pred_check
      _
    $region39: #{tpu_custom_call.1} parent=1 // pred_check_branch
      %356 = sbr.rel (0) target = $region41
    $region40: #{tpu_custom_call.1} parent=1 // pred_region
      %s358 = ssub.s32 128, 128
      %359 = vsyncadd [#allocation4], %s358
      %s361 = sshll.u32 [#allocation10], 4
      %s362 = int_to_ptr.vmem [resolvable:$true] %s361
      %364 = dma.vmem_to_hbm [thread:$0]  %s362, 128, %s5, [#allocation4]
    $region41: #{tpu_custom_call.1} parent=1 // pred_fallthru
      _
    // Predicated region
    $region42: #{tpu_custom_call.1} parent=1 // pred_check
      _
    $region43: #{tpu_custom_call.1} parent=1 // pred_check_branch
      %366 = sbr.rel (0) target = $region45
    $region44: #{tpu_custom_call.1} parent=1 // pred_region
      %367 = dma.done [#allocation4], 128
    $region45: #{tpu_custom_call.1} parent=1 // pred_fallthru
      _
    %368 = vsyncpa [#allocation3], 1
    %369 = vsyncpa [#allocation6], 1
    %370 = vsyncpa [#allocation9], 1
    %371 = vsyncpa [#allocation4], 1

</llo_original>
